<compile_context>
chip_gen: v7x
topology: tpu7x:2x2x1
jax: 0.10.0
libtpu: 0.0.40
codegen_flags: <defaults>
</compile_context>

<pallas_src>
import functools

import jax
import jax.numpy as jnp
from jax.experimental import pallas as pl
from jax.experimental.pallas import tpu as pltpu

BN_EPS = 1e-5
LANES = 128


def _softplus(x):
    # matches torch.nn.functional.softplus (beta=1, threshold=20)
    return jnp.where(x > 20.0, x, jnp.log1p(jnp.exp(jnp.minimum(x, 20.0))))


# --------------------------------------------------------------------------- #
# Kernel
# --------------------------------------------------------------------------- #
def make_fnn_actor_kernel(batch, num_blocks, lstm_hidden):
    """Kernel over packed slabs.

    Weight slab  (num_blocks + 5, 128, 128): [block_0..block_{nb-1}, lstm_fused,
                                              liner1, liner2, fc_mu, fc_std]
    Vector slab  (num_blocks + 7, 128):      [block biases..., lstm bias (b_ih+b_hh),
                                              b1, b2, b_mu, b_std, mu_scale, mu_shift]
    State slab   (3, B, 128):                [x_pad, h0 placed at lanes[flat:flat+H], c0]
    Output slab  (4, B, 128):                [mu, std, h_new, c_new] (lane-padded)
    """
    H = lstm_hidden
    w_lstm = num_blocks
    w_l1, w_l2, w_mu, w_std = num_blocks + 1, num_blocks + 2, num_blocks + 3, num_blocks + 4
    v_lstm = num_blocks
    v_l1, v_l2, v_mu, v_std = num_blocks + 1, num_blocks + 2, num_blocks + 3, num_blocks + 4
    v_scale, v_shift = num_blocks + 5, num_blocks + 6

    def kernel(w_ref, v_ref, s_ref, out_ref):
        def vec(i):  # (1, 128) static slice of the vector slab
            return v_ref[i:i + 1, :]

        f32 = jnp.float32

        # ---- FnnBlocks: (Linear + folded BN) -> ReLU -> Dropout(eval = identity)
        h = s_ref[0]                                               # (B, 128), x in lanes[:input_dim]
        for k in range(num_blocks):
            h = jnp.dot(h, w_ref[k], preferred_element_type=f32) + vec(k)
            h = jnp.maximum(h, 0.0)                                # padded lanes stay exactly 0

        # ---- LSTM, batch_first, seq_len == 1  =>  one fused LSTMCell step
        # h valid in lanes[:flat] (zeros elsewhere); h0 pre-placed at lanes[flat:flat+H]
        lstm_in = h + s_ref[1]                                     # single VPU add, no lane concat
        gates = jnp.dot(lstm_in, w_ref[w_lstm], preferred_element_type=f32) + vec(v_lstm)
        i_g = jax.nn.sigmoid(gates[:, 0:H])
        f_g = jax.nn.sigmoid(gates[:, H:2 * H])
        g_g = jnp.tanh(gates[:, 2 * H:3 * H])
        o_g = jax.nn.sigmoid(gates[:, 3 * H:4 * H])
        c0 = s_ref[2][:, 0:H]
        c_new = f_g * c0 + i_g * g_g                               # (B, H)
        h_new = o_g * jnp.tanh(c_new)                              # (B, H)

        # pad states back to a full 128-lane vreg (zeros in padded lanes)
        pad = jnp.zeros((batch, LANES - H), f32)
        h_new_p = jnp.concatenate([h_new, pad], axis=1)            # (B, 128)
        c_new_p = jnp.concatenate([c_new, pad], axis=1)            # (B, 128)

        # ---- head: liner1 -> relu -> liner2 + residual -> relu -> mu / std
        y = jnp.maximum(jnp.dot(h_new_p, w_ref[w_l1], preferred_element_type=f32) + vec(v_l1), 0.0)
        y = jnp.maximum(jnp.dot(y, w_ref[w_l2], preferred_element_type=f32) + vec(v_l2) + y, 0.0)
        mu = jnp.tanh(jnp.dot(y, w_ref[w_mu], preferred_element_type=f32) + vec(v_mu))
        mu = mu * vec(v_scale) + vec(v_shift)
        std = _softplus(jnp.dot(y, w_ref[w_std], preferred_element_type=f32) + vec(v_std))

        # ---- single lane-dense output slab
        out_ref[0, :, :] = mu
        out_ref[1, :, :] = std
        out_ref[2, :, :] = h_new_p
        out_ref[3, :, :] = c_new_p

    return kernel


# --------------------------------------------------------------------------- #
# Host-side parameter packing (one-time cost)
# --------------------------------------------------------------------------- #
def pack_params(params, *, input_dim, model_info, lstm_hidden):
    H = lstm_hidden
    flat = model_info[-1]
    assert input_dim <= LANES and max(model_info) <= LANES
    assert flat + H <= LANES and 4 * H <= LANES

    def pad_w(w_t):  # (in, out) -> (128, 128), zero padded
        return jnp.zeros((LANES, LANES), jnp.float32).at[:w_t.shape[0], :w_t.shape[1]].set(w_t)

    def pad_v(v):    # (1, k) / (k,) -> (128,), zero padded
        v = v.reshape(-1).astype(jnp.float32)
        return jnp.zeros((LANES,), jnp.float32).at[:v.shape[0]].set(v)

    w_list, v_list = [], []

    # FNN blocks with BatchNorm folded into the Linear (eval-mode, exact)
    for blk in params["blocks"]:
        s = blk["gamma"] / jnp.sqrt(blk["rv"] + BN_EPS)            # (1, out)
        w_fold = blk["W"] * s.reshape(-1, 1)                       # (out, in)
        b_fold = (blk["b"] - blk["rm"]) * s + blk["beta"]          # (1, out)
        w_list.append(pad_w(w_fold.T))
        v_list.append(pad_v(b_fold))

    # Fused LSTM weight: rows [0:flat] = w_ih^T, rows [flat:flat+H] = w_hh^T
    w_lstm = jnp.zeros((LANES, LANES), jnp.float32)
    w_lstm = w_lstm.at[:flat, :4 * H].set(params["w_ih"].T)
    w_lstm = w_lstm.at[flat:flat + H, :4 * H].set(params["w_hh"].T)
    w_list.append(w_lstm)
    v_list.append(pad_v(params["b_ih"] + params["b_hh"]))

    # Residual head + output layers (pre-transposed)
    for wk, bk in (("w1", "b1"), ("w2", "b2"), ("wmu", "bmu"), ("wstd", "bstd")):
        w_list.append(pad_w(params[wk].T))
        v_list.append(pad_v(params[bk]))
    v_list.append(pad_v(params["mu_scale"]))
    v_list.append(pad_v(params["mu_shift"]))

    w_slab = jnp.stack(w_list)   # (num_blocks + 5, 128, 128)
    v_slab = jnp.stack(v_list)   # (num_blocks + 7, 128)
    return w_slab, v_slab


# --------------------------------------------------------------------------- #
# Forward wrapper
# --------------------------------------------------------------------------- #
def fnn_actor_forward(w_slab, v_slab, x, h0, c0, *,
                      num_blocks, input_dim, flat, lstm_hidden):
    B = x.shape[0]
    H = lstm_hidden

    # one runtime-state slab: x (lanes[:input_dim]), h0 (lanes[flat:flat+H]), c0 (lanes[:H])
    state = jnp.zeros((3, B, LANES), jnp.float32)
    state = state.at[0, :, :input_dim].set(x.reshape(B, -1).astype(jnp.float32))
    state = state.at[1, :, flat:flat + H].set(h0.reshape(B, H).astype(jnp.float32))
    state = state.at[2, :, :H].set(c0.reshape(B, H).astype(jnp.float32))

    vmem = pl.BlockSpec(memory_space=pltpu.MemorySpace.VMEM)
    out = pl.pallas_call(
        make_fnn_actor_kernel(B, num_blocks, H),
        out_shape=jax.ShapeDtypeStruct((4, B, LANES), jnp.float32),
        in_specs=[vmem, vmem, vmem],
        out_specs=vmem,
    )(w_slab, v_slab, state)

    mu = out[0, :, :2]
    std = out[1, :, :2]
    h_new = out[2, :, :H].reshape(1, B, H)   # PyTorch LSTM state shape (num_layers=1, B, H)
    c_new = out[3, :, :H].reshape(1, B, H)
    return mu, std, (h_new, c_new)


# ------------------------- pure-JAX reference (for checking) ----------------- #
def fnn_actor_reference(params, x, h0, c0, *, lstm_hidden):
    h = x
    for blk in params["blocks"]:
        h = h @ blk["W"].T + blk["b"]
        h = blk["gamma"] * (h - blk["rm"]) / jnp.sqrt(blk["rv"] + BN_EPS) + blk["beta"]
        h = jnp.maximum(h, 0.0)
    H = lstm_hidden
    h0f = h0.reshape(-1, H); c0f = c0.reshape(-1, H)
    gates = h @ params["w_ih"].T + params["b_ih"] + h0f @ params["w_hh"].T + params["b_hh"]
    i_g = jax.nn.sigmoid(gates[:, 0:H]); f_g = jax.nn.sigmoid(gates[:, H:2 * H])
    g_g = jnp.tanh(gates[:, 2 * H:3 * H]); o_g = jax.nn.sigmoid(gates[:, 3 * H:4 * H])
    c_new = f_g * c0f + i_g * g_g
    h_new = o_g * jnp.tanh(c_new)
    y = jnp.maximum(h_new @ params["w1"].T + params["b1"], 0.0)
    y = jnp.maximum((y @ params["w2"].T + params["b2"]) + y, 0.0)
    mu = jnp.tanh(y @ params["wmu"].T + params["bmu"]) * params["mu_scale"] + params["mu_shift"]
    std = jax.nn.softplus(y @ params["wstd"].T + params["bstd"])
    return mu, std, h_new, c_new


# ------------------------- deterministic parameter init ---------------------- #
def init_params(key, input_dim, model_info, lstm_hidden):
    params = {"blocks": []}
    keys = iter(jax.random.split(key, 64))

    def lin(kout, kin):
        bound = 1.0 / jnp.sqrt(kin)
        W = jax.random.uniform(next(keys), (kout, kin), jnp.float32, -bound, bound)
        b = jax.random.uniform(next(keys), (1, kout), jnp.float32, -bound, bound)
        return W, b

    last = input_dim
    for hdim in model_info:
        W, b = lin(hdim, last)
        params["blocks"].append({
            "W": W, "b": b,
            "gamma": jax.random.uniform(next(keys), (1, hdim), jnp.float32, 0.5, 1.5),
            "beta": jax.random.uniform(next(keys), (1, hdim), jnp.float32, -0.5, 0.5),
            "rm": jax.random.uniform(next(keys), (1, hdim), jnp.float32, -0.5, 0.5),
            "rv": jax.random.uniform(next(keys), (1, hdim), jnp.float32, 0.5, 1.5),
        })
        last = hdim

    flattened = last
    H = lstm_hidden
    bound = 1.0 / jnp.sqrt(H)
    params["w_ih"] = jax.random.uniform(next(keys), (4 * H, flattened), jnp.float32, -bound, bound)
    params["w_hh"] = jax.random.uniform(next(keys), (4 * H, H), jnp.float32, -bound, bound)
    params["b_ih"] = jax.random.uniform(next(keys), (1, 4 * H), jnp.float32, -bound, bound)
    params["b_hh"] = jax.random.uniform(next(keys), (1, 4 * H), jnp.float32, -bound, bound)

    params["w1"], params["b1"] = lin(H, H)
    params["w2"], params["b2"] = lin(H, H)
    params["wmu"], params["bmu"] = lin(2, H)
    params["wstd"], params["bstd"] = lin(2, H)

    params["mu_scale"] = jnp.array([[150.0, 30.0]], jnp.float32)
    params["mu_shift"] = jnp.array([[50.0, 0.0]], jnp.float32)
    return params


if __name__ == "__main__":
    # config: input_dim=16, model_info=[32, 32], rnn_or_lstm='lstm', lstm_hidden_size=32
    B, INPUT_DIM, MODEL_INFO, LSTM_H = 2, 16, [32, 32], 32
    FLAT = MODEL_INFO[-1]

    key = jax.random.PRNGKey(0)
    kp, kx, kh, kc = jax.random.split(key, 4)
    params = init_params(kp, INPUT_DIM, MODEL_INFO, LSTM_H)

    x = jax.random.normal(kx, (B, INPUT_DIM), jnp.float32)
    h0 = jax.random.normal(kh, (1, B, LSTM_H), jnp.float32)
    c0 = jax.random.normal(kc, (1, B, LSTM_H), jnp.float32)

    # one-time parameter packing (BN fold + transpose + pad + slab stack)
    w_slab, v_slab = pack_params(params, input_dim=INPUT_DIM,
                                 model_info=MODEL_INFO, lstm_hidden=LSTM_H)

    fwd = jax.jit(functools.partial(
        fnn_actor_forward, num_blocks=len(MODEL_INFO), input_dim=INPUT_DIM,
        flat=FLAT, lstm_hidden=LSTM_H))

    mu, std, (h_new, c_new) = fwd(w_slab, v_slab, x, h0, c0)
    jax.block_until_ready((mu, std, h_new, c_new))

    mu_r, std_r, h_r, c_r = fnn_actor_reference(params, x, h0, c0, lstm_hidden=LSTM_H)
    assert jnp.allclose(mu, mu_r, atol=1e-3, rtol=1e-3), "mu mismatch"
    assert jnp.allclose(std, std_r, atol=1e-4, rtol=1e-3), "std mismatch"
    assert jnp.allclose(h_new.reshape(B, LSTM_H), h_r, atol=1e-4, rtol=1e-3), "h mismatch"
    assert jnp.allclose(c_new.reshape(B, LSTM_H), c_r, atol=1e-4, rtol=1e-3), "c mismatch"

    print("KERNEL_OK")
</pallas_src>

<mosaic_0001>
module attributes {stable_mosaic.version = 11 : i64} {
  func.func @kernel(%arg0: memref<7x128x128xf32, #tpu.memory_space<vmem>>, %arg1: memref<9x128xf32, #tpu.memory_space<vmem>>, %arg2: memref<3x2x128xf32, #tpu.memory_space<vmem>>, %arg3: memref<4x2x128xf32, #tpu.memory_space<vmem>>) attributes {dimension_semantics = [], scalar_prefetch = 0 : i64, scratch_operands = 0 : i64, tpu.core_type = #tpu.core_type<tc>} {
    %c0 = arith.constant 0 : index
    %c0_0 = arith.constant 0 : index
    %c0_1 = arith.constant 0 : index
    %0 = vector.load %arg2[%c0, %c0_0, %c0_1] : memref<3x2x128xf32, #tpu.memory_space<vmem>>, vector<1x2x128xf32>
    %1 = vector.shape_cast %0 : vector<1x2x128xf32> to vector<2x128xf32>
    %c0_2 = arith.constant 0 : index
    %c0_3 = arith.constant 0 : index
    %c0_4 = arith.constant 0 : index
    %2 = vector.load %arg0[%c0_2, %c0_3, %c0_4] : memref<7x128x128xf32, #tpu.memory_space<vmem>>, vector<1x128x128xf32>
    %3 = vector.shape_cast %2 : vector<1x128x128xf32> to vector<128x128xf32>
    %cst = arith.constant dense<0.000000e+00> : vector<2x128xf32>
    %4 = tpu.matmul %1, %3, %cst {dimension_numbers = #tpu.dot_dimension_numbers<[1], [0], [0], [1], [0, 0, 1, 1], [], []>} : vector<2x128xf32>, vector<128x128xf32>, vector<2x128xf32> -> vector<2x128xf32>
    %c0_5 = arith.constant 0 : index
    %c0_6 = arith.constant 0 : index
    %5 = vector.load %arg1[%c0_5, %c0_6] : memref<9x128xf32, #tpu.memory_space<vmem>>, vector<1x128xf32>
    %6 = vector.broadcast %5 : vector<1x128xf32> to vector<2x128xf32>
    %7 = arith.addf %4, %6 : vector<2x128xf32>
    %cst_7 = arith.constant 0.000000e+00 : f32
    %8 = vector.broadcast %cst_7 : f32 to vector<2x128xf32>
    %9 = arith.maximumf %7, %8 : vector<2x128xf32>
    %c1 = arith.constant 1 : index
    %c0_8 = arith.constant 0 : index
    %c0_9 = arith.constant 0 : index
    %10 = vector.load %arg0[%c1, %c0_8, %c0_9] : memref<7x128x128xf32, #tpu.memory_space<vmem>>, vector<1x128x128xf32>
    %11 = vector.shape_cast %10 : vector<1x128x128xf32> to vector<128x128xf32>
    %cst_10 = arith.constant dense<0.000000e+00> : vector<2x128xf32>
    %12 = tpu.matmul %9, %11, %cst_10 {dimension_numbers = #tpu.dot_dimension_numbers<[1], [0], [0], [1], [0, 0, 1, 1], [], []>} : vector<2x128xf32>, vector<128x128xf32>, vector<2x128xf32> -> vector<2x128xf32>
    %c1_11 = arith.constant 1 : index
    %c0_12 = arith.constant 0 : index
    %13 = vector.load %arg1[%c1_11, %c0_12] : memref<9x128xf32, #tpu.memory_space<vmem>>, vector<1x128xf32>
    %14 = vector.broadcast %13 : vector<1x128xf32> to vector<2x128xf32>
    %15 = arith.addf %12, %14 : vector<2x128xf32>
    %cst_13 = arith.constant 0.000000e+00 : f32
    %16 = vector.broadcast %cst_13 : f32 to vector<2x128xf32>
    %17 = arith.maximumf %15, %16 : vector<2x128xf32>
    %c1_14 = arith.constant 1 : index
    %c0_15 = arith.constant 0 : index
    %c0_16 = arith.constant 0 : index
    %18 = vector.load %arg2[%c1_14, %c0_15, %c0_16] : memref<3x2x128xf32, #tpu.memory_space<vmem>>, vector<1x2x128xf32>
    %19 = vector.shape_cast %18 : vector<1x2x128xf32> to vector<2x128xf32>
    %20 = arith.addf %17, %19 : vector<2x128xf32>
    %c2 = arith.constant 2 : index
    %c0_17 = arith.constant 0 : index
    %c0_18 = arith.constant 0 : index
    %21 = vector.load %arg0[%c2, %c0_17, %c0_18] : memref<7x128x128xf32, #tpu.memory_space<vmem>>, vector<1x128x128xf32>
    %22 = vector.shape_cast %21 : vector<1x128x128xf32> to vector<128x128xf32>
    %cst_19 = arith.constant dense<0.000000e+00> : vector<2x128xf32>
    %23 = tpu.matmul %20, %22, %cst_19 {dimension_numbers = #tpu.dot_dimension_numbers<[1], [0], [0], [1], [0, 0, 1, 1], [], []>} : vector<2x128xf32>, vector<128x128xf32>, vector<2x128xf32> -> vector<2x128xf32>
    %c2_20 = arith.constant 2 : index
    %c0_21 = arith.constant 0 : index
    %24 = vector.load %arg1[%c2_20, %c0_21] : memref<9x128xf32, #tpu.memory_space<vmem>>, vector<1x128xf32>
    %25 = vector.broadcast %24 : vector<1x128xf32> to vector<2x128xf32>
    %26 = arith.addf %23, %25 : vector<2x128xf32>
    %27 = vector.extract_strided_slice %26 {offsets = [0, 0], sizes = [2, 32], strides = [1, 1]} : vector<2x128xf32> to vector<2x32xf32>
    %28 = arith.negf %27 : vector<2x32xf32>
    %29 = math.exp %28 : vector<2x32xf32>
    %cst_22 = arith.constant 1.000000e+00 : f32
    %30 = vector.broadcast %cst_22 : f32 to vector<2x32xf32>
    %31 = arith.addf %30, %29 : vector<2x32xf32>
    %32 = arith.divf %30, %31 : vector<2x32xf32>
    %33 = vector.extract_strided_slice %26 {offsets = [0, 32], sizes = [2, 32], strides = [1, 1]} : vector<2x128xf32> to vector<2x32xf32>
    %34 = arith.negf %33 : vector<2x32xf32>
    %35 = math.exp %34 : vector<2x32xf32>
    %cst_23 = arith.constant 1.000000e+00 : f32
    %36 = vector.broadcast %cst_23 : f32 to vector<2x32xf32>
    %37 = arith.addf %36, %35 : vector<2x32xf32>
    %38 = arith.divf %36, %37 : vector<2x32xf32>
    %39 = vector.extract_strided_slice %26 {offsets = [0, 64], sizes = [2, 32], strides = [1, 1]} : vector<2x128xf32> to vector<2x32xf32>
    %40 = math.tanh %39 : vector<2x32xf32>
    %41 = vector.extract_strided_slice %26 {offsets = [0, 96], sizes = [2, 32], strides = [1, 1]} : vector<2x128xf32> to vector<2x32xf32>
    %42 = arith.negf %41 : vector<2x32xf32>
    %43 = math.exp %42 : vector<2x32xf32>
    %cst_24 = arith.constant 1.000000e+00 : f32
    %44 = vector.broadcast %cst_24 : f32 to vector<2x32xf32>
    %45 = arith.addf %44, %43 : vector<2x32xf32>
    %46 = arith.divf %44, %45 : vector<2x32xf32>
    %c2_25 = arith.constant 2 : index
    %c0_26 = arith.constant 0 : index
    %c0_27 = arith.constant 0 : index
    %47 = vector.load %arg2[%c2_25, %c0_26, %c0_27] : memref<3x2x128xf32, #tpu.memory_space<vmem>>, vector<1x2x128xf32>
    %48 = vector.shape_cast %47 : vector<1x2x128xf32> to vector<2x128xf32>
    %49 = vector.extract_strided_slice %48 {offsets = [0, 0], sizes = [2, 32], strides = [1, 1]} : vector<2x128xf32> to vector<2x32xf32>
    %50 = arith.mulf %38, %49 : vector<2x32xf32>
    %51 = arith.mulf %32, %40 : vector<2x32xf32>
    %52 = arith.addf %50, %51 : vector<2x32xf32>
    %53 = math.tanh %52 : vector<2x32xf32>
    %54 = arith.mulf %46, %53 : vector<2x32xf32>
    %cst_28 = arith.constant 0.000000e+00 : f32
    %55 = vector.broadcast %cst_28 : f32 to vector<2x96xf32>
    %56 = tpu.concatenate %54, %55 in 1 : vector<2x32xf32>, vector<2x96xf32> -> vector<2x128xf32>
    %57 = tpu.concatenate %52, %55 in 1 : vector<2x32xf32>, vector<2x96xf32> -> vector<2x128xf32>
    %c3 = arith.constant 3 : index
    %c0_29 = arith.constant 0 : index
    %c0_30 = arith.constant 0 : index
    %58 = vector.load %arg0[%c3, %c0_29, %c0_30] : memref<7x128x128xf32, #tpu.memory_space<vmem>>, vector<1x128x128xf32>
    %59 = vector.shape_cast %58 : vector<1x128x128xf32> to vector<128x128xf32>
    %cst_31 = arith.constant dense<0.000000e+00> : vector<2x128xf32>
    %60 = tpu.matmul %56, %59, %cst_31 {dimension_numbers = #tpu.dot_dimension_numbers<[1], [0], [0], [1], [0, 0, 1, 1], [], []>} : vector<2x128xf32>, vector<128x128xf32>, vector<2x128xf32> -> vector<2x128xf32>
    %c3_32 = arith.constant 3 : index
    %c0_33 = arith.constant 0 : index
    %61 = vector.load %arg1[%c3_32, %c0_33] : memref<9x128xf32, #tpu.memory_space<vmem>>, vector<1x128xf32>
    %62 = vector.broadcast %61 : vector<1x128xf32> to vector<2x128xf32>
    %63 = arith.addf %60, %62 : vector<2x128xf32>
    %cst_34 = arith.constant 0.000000e+00 : f32
    %64 = vector.broadcast %cst_34 : f32 to vector<2x128xf32>
    %65 = arith.maximumf %63, %64 : vector<2x128xf32>
    %c4 = arith.constant 4 : index
    %c0_35 = arith.constant 0 : index
    %c0_36 = arith.constant 0 : index
    %66 = vector.load %arg0[%c4, %c0_35, %c0_36] : memref<7x128x128xf32, #tpu.memory_space<vmem>>, vector<1x128x128xf32>
    %67 = vector.shape_cast %66 : vector<1x128x128xf32> to vector<128x128xf32>
    %cst_37 = arith.constant dense<0.000000e+00> : vector<2x128xf32>
    %68 = tpu.matmul %65, %67, %cst_37 {dimension_numbers = #tpu.dot_dimension_numbers<[1], [0], [0], [1], [0, 0, 1, 1], [], []>} : vector<2x128xf32>, vector<128x128xf32>, vector<2x128xf32> -> vector<2x128xf32>
    %c4_38 = arith.constant 4 : index
    %c0_39 = arith.constant 0 : index
    %69 = vector.load %arg1[%c4_38, %c0_39] : memref<9x128xf32, #tpu.memory_space<vmem>>, vector<1x128xf32>
    %70 = vector.broadcast %69 : vector<1x128xf32> to vector<2x128xf32>
    %71 = arith.addf %68, %70 : vector<2x128xf32>
    %72 = arith.addf %71, %65 : vector<2x128xf32>
    %cst_40 = arith.constant 0.000000e+00 : f32
    %73 = vector.broadcast %cst_40 : f32 to vector<2x128xf32>
    %74 = arith.maximumf %72, %73 : vector<2x128xf32>
    %c5 = arith.constant 5 : index
    %c0_41 = arith.constant 0 : index
    %c0_42 = arith.constant 0 : index
    %75 = vector.load %arg0[%c5, %c0_41, %c0_42] : memref<7x128x128xf32, #tpu.memory_space<vmem>>, vector<1x128x128xf32>
    %76 = vector.shape_cast %75 : vector<1x128x128xf32> to vector<128x128xf32>
    %cst_43 = arith.constant dense<0.000000e+00> : vector<2x128xf32>
    %77 = tpu.matmul %74, %76, %cst_43 {dimension_numbers = #tpu.dot_dimension_numbers<[1], [0], [0], [1], [0, 0, 1, 1], [], []>} : vector<2x128xf32>, vector<128x128xf32>, vector<2x128xf32> -> vector<2x128xf32>
    %c5_44 = arith.constant 5 : index
    %c0_45 = arith.constant 0 : index
    %78 = vector.load %arg1[%c5_44, %c0_45] : memref<9x128xf32, #tpu.memory_space<vmem>>, vector<1x128xf32>
    %79 = vector.broadcast %78 : vector<1x128xf32> to vector<2x128xf32>
    %80 = arith.addf %77, %79 : vector<2x128xf32>
    %81 = math.tanh %80 : vector<2x128xf32>
    %c7 = arith.constant 7 : index
    %c0_46 = arith.constant 0 : index
    %82 = vector.load %arg1[%c7, %c0_46] : memref<9x128xf32, #tpu.memory_space<vmem>>, vector<1x128xf32>
    %83 = vector.broadcast %82 : vector<1x128xf32> to vector<2x128xf32>
    %84 = arith.mulf %81, %83 : vector<2x128xf32>
    %c8 = arith.constant 8 : index
    %c0_47 = arith.constant 0 : index
    %85 = vector.load %arg1[%c8, %c0_47] : memref<9x128xf32, #tpu.memory_space<vmem>>, vector<1x128xf32>
    %86 = vector.broadcast %85 : vector<1x128xf32> to vector<2x128xf32>
    %87 = arith.addf %84, %86 : vector<2x128xf32>
    %c6 = arith.constant 6 : index
    %c0_48 = arith.constant 0 : index
    %c0_49 = arith.constant 0 : index
    %88 = vector.load %arg0[%c6, %c0_48, %c0_49] : memref<7x128x128xf32, #tpu.memory_space<vmem>>, vector<1x128x128xf32>
    %89 = vector.shape_cast %88 : vector<1x128x128xf32> to vector<128x128xf32>
    %cst_50 = arith.constant dense<0.000000e+00> : vector<2x128xf32>
    %90 = tpu.matmul %74, %89, %cst_50 {dimension_numbers = #tpu.dot_dimension_numbers<[1], [0], [0], [1], [0, 0, 1, 1], [], []>} : vector<2x128xf32>, vector<128x128xf32>, vector<2x128xf32> -> vector<2x128xf32>
    %c6_51 = arith.constant 6 : index
    %c0_52 = arith.constant 0 : index
    %91 = vector.load %arg1[%c6_51, %c0_52] : memref<9x128xf32, #tpu.memory_space<vmem>>, vector<1x128xf32>
    %92 = vector.broadcast %91 : vector<1x128xf32> to vector<2x128xf32>
    %93 = arith.addf %90, %92 : vector<2x128xf32>
    %cst_53 = arith.constant 2.000000e+01 : f32
    %94 = vector.broadcast %cst_53 : f32 to vector<2x128xf32>
    %95 = arith.cmpf ogt, %93, %94 : vector<2x128xf32>
    %cst_54 = arith.constant 2.000000e+01 : f32
    %96 = vector.broadcast %cst_54 : f32 to vector<2x128xf32>
    %97 = arith.minimumf %93, %96 : vector<2x128xf32>
    %98 = math.exp %97 : vector<2x128xf32>
    %99 = math.log1p %98 : vector<2x128xf32>
    %100 = arith.select %95, %93, %99 : vector<2x128xi1>, vector<2x128xf32>
    %c0_55 = arith.constant 0 : index
    %c0_56 = arith.constant 0 : index
    %c0_57 = arith.constant 0 : index
    %101 = vector.load %arg3[%c0_55, %c0_56, %c0_57] : memref<4x2x128xf32, #tpu.memory_space<vmem>>, vector<1x2x128xf32>
    %102 = vector.shape_cast %101 : vector<1x2x128xf32> to vector<2x128xf32>
    %103 = vector.shape_cast %87 : vector<2x128xf32> to vector<1x2x128xf32>
    tpu.vector_store %arg3[%c0_55, %c0_56, %c0_57], %103 {strides = array<i32>} : memref<4x2x128xf32, #tpu.memory_space<vmem>>, vector<1x2x128xf32>,
    %c1_58 = arith.constant 1 : index
    %c0_59 = arith.constant 0 : index
    %c0_60 = arith.constant 0 : index
    %104 = vector.load %arg3[%c1_58, %c0_59, %c0_60] : memref<4x2x128xf32, #tpu.memory_space<vmem>>, vector<1x2x128xf32>
    %105 = vector.shape_cast %104 : vector<1x2x128xf32> to vector<2x128xf32>
    %106 = vector.shape_cast %100 : vector<2x128xf32> to vector<1x2x128xf32>
    tpu.vector_store %arg3[%c1_58, %c0_59, %c0_60], %106 {strides = array<i32>} : memref<4x2x128xf32, #tpu.memory_space<vmem>>, vector<1x2x128xf32>,
    %c2_61 = arith.constant 2 : index
    %c0_62 = arith.constant 0 : index
    %c0_63 = arith.constant 0 : index
    %107 = vector.load %arg3[%c2_61, %c0_62, %c0_63] : memref<4x2x128xf32, #tpu.memory_space<vmem>>, vector<1x2x128xf32>
    %108 = vector.shape_cast %107 : vector<1x2x128xf32> to vector<2x128xf32>
    %109 = vector.shape_cast %56 : vector<2x128xf32> to vector<1x2x128xf32>
    tpu.vector_store %arg3[%c2_61, %c0_62, %c0_63], %109 {strides = array<i32>} : memref<4x2x128xf32, #tpu.memory_space<vmem>>, vector<1x2x128xf32>,
    %c3_64 = arith.constant 3 : index
    %c0_65 = arith.constant 0 : index
    %c0_66 = arith.constant 0 : index
    %110 = vector.load %arg3[%c3_64, %c0_65, %c0_66] : memref<4x2x128xf32, #tpu.memory_space<vmem>>, vector<1x2x128xf32>
    %111 = vector.shape_cast %110 : vector<1x2x128xf32> to vector<2x128xf32>
    %112 = vector.shape_cast %57 : vector<2x128xf32> to vector<1x2x128xf32>
    tpu.vector_store %arg3[%c3_64, %c0_65, %c0_66], %112 {strides = array<i32>} : memref<4x2x128xf32, #tpu.memory_space<vmem>>, vector<1x2x128xf32>,
    return
  }
}

</mosaic_0001>

<llo_original>
// kernel: fnn_actor_forward.1
$region0: #{fnn_actor_forward.1}
  #allocation0 [shape = 'u32[]', space=smem, size = 0x4, offset = 0x4, fixed_abs, tag = 'smem constant byte address 0x4 - core index']
  #allocation1 [shape = 'u32[144,128]{1,0:T(1,128)}', space=vmem, size = 0x12000, scoped, tag = 'internal scratch']
  %s0 = inlined_call_operand.hbm [shape: f32[7,128,128], index: 0, kind: input, shape index: {}]
  %s1 = inlined_call_operand.vmem [shape: f32[9,128], index: 1, kind: input, shape index: {}]
  %s2 = inlined_call_operand.vmem [shape: f32[3,2,128], index: 2, kind: input, shape index: {}]
  %s3 = inlined_call_operand.vmem [shape: f32[4,2,128], index: 3, kind: output, shape index: {}]
  %s4 = sld [smem:[#allocation0]]
  $region26: #{fnn_actor_forward.1} parent=0
    _
  %s6 = ssub.s32 1, %s4
  %s7 = scalar_select 0, %s6, %s4
  $region1: #{fnn_actor_forward.1} parent=0
    #allocation2 [shape = 'u8[458752]{0}', space=vmem, size = 0x70000, scoped, tag = 'input window, operand 0, single buffered']
    #allocation3 [shape = 's32[1]{0}', space=sflag, size = 0x4, scoped, tag = 'scoped memory for fnn_actor_forward.1']
    %8 = vsyncpa [#allocation3], 0
    // Predicated region
    $region2: #{fnn_actor_forward.1} parent=1 // pred_check
      _
    $region3: #{fnn_actor_forward.1} parent=1 // pred_check_branch
      %10 = sbr.rel (0) target = $region5
    $region4: #{fnn_actor_forward.1} parent=1 // pred_region
      %s12 = ssub.s32 14336, 14336
      %13 = vsyncadd [#allocation3], %s12
      %s14 = sshll.u32 [#allocation2], 4
      %s15 = int_to_ptr.vmem [resolvable:$true] %s14
      %20 = dma.hbm_to_vmem [thread:$0]  %s0, 14336, %s15, [#allocation3], 128, 128, 8
    $region5: #{fnn_actor_forward.1} parent=1 // pred_fallthru
      _
    // Predicated region
    $region6: #{fnn_actor_forward.1} parent=1 // pred_check
      _
    $region7: #{fnn_actor_forward.1} parent=1 // pred_check_branch
      %22 = sbr.rel (0) target = $region9
    $region8: #{fnn_actor_forward.1} parent=1 // pred_region
      _
    $region9: #{fnn_actor_forward.1} parent=1 // pred_fallthru
      _
    // Predicated region
    $region10: #{fnn_actor_forward.1} parent=1 // pred_check
      _
    $region11: #{fnn_actor_forward.1} parent=1 // pred_check_branch
      %24 = sbr.rel (0) target = $region13
    $region12: #{fnn_actor_forward.1} parent=1 // pred_region
      _
    $region13: #{fnn_actor_forward.1} parent=1 // pred_fallthru
      _
    // Predicated region
    $region14: #{fnn_actor_forward.1} parent=1 // pred_check
      _
    $region15: #{fnn_actor_forward.1} parent=1 // pred_check_branch
      %26 = sbr.rel (0) target = $region17
    $region16: #{fnn_actor_forward.1} parent=1 // pred_region
      %27 = dma.done [#allocation3], 14336
    $region17: #{fnn_actor_forward.1} parent=1 // pred_fallthru
      _
    %v28 = vld [vmem:[%s2] sm:$0x3]
    %v29 = vld [vmem:[#allocation2] sm:$0xff]
    %v30 = vld [vmem:[#allocation2 + $0x8] sm:$0xff]
    %v31 = vld [vmem:[#allocation2 + $0x10] sm:$0xff]
    %v32 = vld [vmem:[#allocation2 + $0x18] sm:$0xff]
    %v33 = vld [vmem:[#allocation2 + $0x20] sm:$0xff]
    %v34 = vld [vmem:[#allocation2 + $0x28] sm:$0xff]
    %v35 = vld [vmem:[#allocation2 + $0x30] sm:$0xff]
    %v36 = vld [vmem:[#allocation2 + $0x38] sm:$0xff]
    %v37 = vld [vmem:[#allocation2 + $0x40] sm:$0xff]
    %v38 = vld [vmem:[#allocation2 + $0x48] sm:$0xff]
    %v39 = vld [vmem:[#allocation2 + $0x50] sm:$0xff]
    %v40 = vld [vmem:[#allocation2 + $0x58] sm:$0xff]
    %v41 = vld [vmem:[#allocation2 + $0x60] sm:$0xff]
    %v42 = vld [vmem:[#allocation2 + $0x68] sm:$0xff]
    %v43 = vld [vmem:[#allocation2 + $0x70] sm:$0xff]
    %v44 = vld [vmem:[#allocation2 + $0x78] sm:$0xff]
    %v45 = vld [vmem:[%s1] sm:$0x1]
    %v46 = vlaneseq
    %v47 = vshrl.u32 %v46, 7
    %v48 = vsub.s32 0, %v47
    %v49 = vrot.slane %v45, %v48
    %50 = vmatprep.subr.mxu0 0.0
    %51 = vmatpush1.msra.mxu0 %v29
    %52 = vmatprep.subr.mxu0 0.0
    %53 = vmatpush1.msra.mxu0 %v30
    %54 = vmatprep.subr.mxu0 0.0
    %55 = vmatpush1.msra.mxu0 %v31
    %56 = vmatprep.subr.mxu0 0.0
    %57 = vmatpush1.msra.mxu0 %v32
    %58 = vmatprep.subr.mxu0 0.0
    %59 = vmatpush1.msra.mxu0 %v33
    %60 = vmatprep.subr.mxu0 0.0
    %61 = vmatpush1.msra.mxu0 %v34
    %62 = vmatprep.subr.mxu0 0.0
    %63 = vmatpush1.msra.mxu0 %v35
    %64 = vmatprep.subr.mxu0 0.0
    %65 = vmatpush1.msra.mxu0 %v36
    %66 = vmatprep.subr.mxu0 0.0
    %67 = vmatpush1.msra.mxu0 %v37
    %68 = vmatprep.subr.mxu0 0.0
    %69 = vmatpush1.msra.mxu0 %v38
    %70 = vmatprep.subr.mxu0 0.0
    %71 = vmatpush1.msra.mxu0 %v39
    %72 = vmatprep.subr.mxu0 0.0
    %73 = vmatpush1.msra.mxu0 %v40
    %74 = vmatprep.subr.mxu0 0.0
    %75 = vmatpush1.msra.mxu0 %v41
    %76 = vmatprep.subr.mxu0 0.0
    %77 = vmatpush1.msra.mxu0 %v42
    %78 = vmatprep.subr.mxu0 0.0
    %79 = vmatpush1.msra.mxu0 %v43
    %80 = vmatprep.subr.mxu0 0.0
    %81 = vmatpush1.msra.mxu0 %v44
    %82 = vmatprep.subr.mxu0 0.0
    %83 = vmatpush1.msra.mxu0 0.0
    %84 = vmatprep.subr.mxu0 0.0
    %85 = vmatpush1.msra.mxu0 0.0
    %86 = vmatprep.subr.mxu0 0.0
    %87 = vmatpush1.msra.mxu0 0.0
    %88 = vmatprep.subr.mxu0 0.0
    %89 = vmatpush1.msra.mxu0 0.0
    %90 = vmatprep.subr.mxu0 0.0
    %91 = vmatpush1.msra.mxu0 0.0
    %92 = vmatprep.subr.mxu0 0.0
    %93 = vmatpush1.msra.mxu0 0.0
    %94 = vmatprep.subr.mxu0 0.0
    %95 = vmatpush1.msra.mxu0 0.0
    %96 = vmatprep.subr.mxu0 0.0
    %97 = vmatpush1.msra.mxu0 0.0
    %98 = vmatprep.subr.mxu0 0.0
    %99 = vmatpush1.msra.mxu0 0.0
    %100 = vmatprep.subr.mxu0 0.0
    %101 = vmatpush1.msra.mxu0 0.0
    %102 = vmatprep.subr.mxu0 0.0
    %103 = vmatpush1.msra.mxu0 0.0
    %104 = vmatprep.subr.mxu0 0.0
    %105 = vmatpush1.msra.mxu0 0.0
    %106 = vmatprep.subr.mxu0 0.0
    %107 = vmatpush1.msra.mxu0 0.0
    %108 = vmatprep.subr.mxu0 0.0
    %109 = vmatpush1.msra.mxu0 0.0
    %110 = vmatprep.subr.mxu0 0.0
    %111 = vmatpush1.msra.mxu0 0.0
    %112 = vmatprep.subr.mxu0 0.0
    %113 = vmatpush1.msra.mxu0 0.0
    %114 = vmatprep.mubr.f32.mxu0 0.0
    %115 = vmatmul.mubr.f32.gmra.mrb[0].mxu0 %v28
    %v116 = vpop.f32.mrb[0].mxu0
    %v117 = vadd.f32 %v49, %v116
    %v118 = vpop.f32.mrb[0].mxu0
    %119 = vdwg.mxu0
    %v120 = vmax.f32 %v117, 0.0
    %s121 = scalar_lea.vmem [#allocation2], 128
    %v122 = vld [vmem:[%s121] sm:$0xff]
    %v123 = vld [vmem:[%s121 + $0x8] sm:$0xff]
    %v124 = vld [vmem:[%s121 + $0x10] sm:$0xff]
    %v125 = vld [vmem:[%s121 + $0x18] sm:$0xff]
    %v126 = vld [vmem:[%s121 + $0x20] sm:$0xff]
    %v127 = vld [vmem:[%s121 + $0x28] sm:$0xff]
    %v128 = vld [vmem:[%s121 + $0x30] sm:$0xff]
    %v129 = vld [vmem:[%s121 + $0x38] sm:$0xff]
    %v130 = vld [vmem:[%s121 + $0x40] sm:$0xff]
    %v131 = vld [vmem:[%s121 + $0x48] sm:$0xff]
    %v132 = vld [vmem:[%s121 + $0x50] sm:$0xff]
    %v133 = vld [vmem:[%s121 + $0x58] sm:$0xff]
    %v134 = vld [vmem:[%s121 + $0x60] sm:$0xff]
    %v135 = vld [vmem:[%s121 + $0x68] sm:$0xff]
    %v136 = vld [vmem:[%s121 + $0x70] sm:$0xff]
    %v137 = vld [vmem:[%s121 + $0x78] sm:$0xff]
    %v138 = vld [vmem:[%s1 + $0x1] sm:$0x1]
    %v139 = vlaneseq
    %v140 = vshrl.u32 %v139, 7
    %v141 = vsub.s32 0, %v140
    %v142 = vrot.slane %v138, %v141
    %143 = vmatprep.subr.mxu0 0.0
    %144 = vmatpush1.msra.mxu0 %v122
    %145 = vmatprep.subr.mxu0 0.0
    %146 = vmatpush1.msra.mxu0 %v123
    %147 = vmatprep.subr.mxu0 0.0
    %148 = vmatpush1.msra.mxu0 %v124
    %149 = vmatprep.subr.mxu0 0.0
    %150 = vmatpush1.msra.mxu0 %v125
    %151 = vmatprep.subr.mxu0 0.0
    %152 = vmatpush1.msra.mxu0 %v126
    %153 = vmatprep.subr.mxu0 0.0
    %154 = vmatpush1.msra.mxu0 %v127
    %155 = vmatprep.subr.mxu0 0.0
    %156 = vmatpush1.msra.mxu0 %v128
    %157 = vmatprep.subr.mxu0 0.0
    %158 = vmatpush1.msra.mxu0 %v129
    %159 = vmatprep.subr.mxu0 0.0
    %160 = vmatpush1.msra.mxu0 %v130
    %161 = vmatprep.subr.mxu0 0.0
    %162 = vmatpush1.msra.mxu0 %v131
    %163 = vmatprep.subr.mxu0 0.0
    %164 = vmatpush1.msra.mxu0 %v132
    %165 = vmatprep.subr.mxu0 0.0
    %166 = vmatpush1.msra.mxu0 %v133
    %167 = vmatprep.subr.mxu0 0.0
    %168 = vmatpush1.msra.mxu0 %v134
    %169 = vmatprep.subr.mxu0 0.0
    %170 = vmatpush1.msra.mxu0 %v135
    %171 = vmatprep.subr.mxu0 0.0
    %172 = vmatpush1.msra.mxu0 %v136
    %173 = vmatprep.subr.mxu0 0.0
    %174 = vmatpush1.msra.mxu0 %v137
    %175 = vmatprep.subr.mxu0 0.0
    %176 = vmatpush1.msra.mxu0 0.0
    %177 = vmatprep.subr.mxu0 0.0
    %178 = vmatpush1.msra.mxu0 0.0
    %179 = vmatprep.subr.mxu0 0.0
    %180 = vmatpush1.msra.mxu0 0.0
    %181 = vmatprep.subr.mxu0 0.0
    %182 = vmatpush1.msra.mxu0 0.0
    %183 = vmatprep.subr.mxu0 0.0
    %184 = vmatpush1.msra.mxu0 0.0
    %185 = vmatprep.subr.mxu0 0.0
    %186 = vmatpush1.msra.mxu0 0.0
    %187 = vmatprep.subr.mxu0 0.0
    %188 = vmatpush1.msra.mxu0 0.0
    %189 = vmatprep.subr.mxu0 0.0
    %190 = vmatpush1.msra.mxu0 0.0
    %191 = vmatprep.subr.mxu0 0.0
    %192 = vmatpush1.msra.mxu0 0.0
    %193 = vmatprep.subr.mxu0 0.0
    %194 = vmatpush1.msra.mxu0 0.0
    %195 = vmatprep.subr.mxu0 0.0
    %196 = vmatpush1.msra.mxu0 0.0
    %197 = vmatprep.subr.mxu0 0.0
    %198 = vmatpush1.msra.mxu0 0.0
    %199 = vmatprep.subr.mxu0 0.0
    %200 = vmatpush1.msra.mxu0 0.0
    %201 = vmatprep.subr.mxu0 0.0
    %202 = vmatpush1.msra.mxu0 0.0
    %203 = vmatprep.subr.mxu0 0.0
    %204 = vmatpush1.msra.mxu0 0.0
    %205 = vmatprep.subr.mxu0 0.0
    %206 = vmatpush1.msra.mxu0 0.0
    %207 = vmatprep.mubr.f32.mxu0 0.0
    %208 = vmatmul.mubr.f32.gmra.mrb[0].mxu0 %v120
    %v209 = vpop.f32.mrb[0].mxu0
    %v210 = vadd.f32 %v142, %v209
    %v211 = vpop.f32.mrb[0].mxu0
    %212 = vdwg.mxu0
    %v213 = vmax.f32 %v210, 0.0
    %s214 = scalar_lea.vmem %s2, 2
    %v215 = vld [vmem:[%s214] sm:$0x3]
    %v216 = vadd.f32 %v213, %v215
    %s217 = scalar_lea.vmem [#allocation2], 256
    %v218 = vld [vmem:[%s217] sm:$0xff]
    %v219 = vld [vmem:[%s217 + $0x8] sm:$0xff]
    %v220 = vld [vmem:[%s217 + $0x10] sm:$0xff]
    %v221 = vld [vmem:[%s217 + $0x18] sm:$0xff]
    %v222 = vld [vmem:[%s217 + $0x20] sm:$0xff]
    %v223 = vld [vmem:[%s217 + $0x28] sm:$0xff]
    %v224 = vld [vmem:[%s217 + $0x30] sm:$0xff]
    %v225 = vld [vmem:[%s217 + $0x38] sm:$0xff]
    %v226 = vld [vmem:[%s217 + $0x40] sm:$0xff]
    %v227 = vld [vmem:[%s217 + $0x48] sm:$0xff]
    %v228 = vld [vmem:[%s217 + $0x50] sm:$0xff]
    %v229 = vld [vmem:[%s217 + $0x58] sm:$0xff]
    %v230 = vld [vmem:[%s217 + $0x60] sm:$0xff]
    %v231 = vld [vmem:[%s217 + $0x68] sm:$0xff]
    %v232 = vld [vmem:[%s217 + $0x70] sm:$0xff]
    %v233 = vld [vmem:[%s217 + $0x78] sm:$0xff]
    %v234 = vld [vmem:[%s1 + $0x2] sm:$0x1]
    %v235 = vlaneseq
    %v236 = vshrl.u32 %v235, 7
    %v237 = vsub.s32 0, %v236
    %v238 = vrot.slane %v234, %v237
    %239 = vmatprep.subr.mxu0 0.0
    %240 = vmatpush1.msra.mxu0 %v218
    %241 = vmatprep.subr.mxu0 0.0
    %242 = vmatpush1.msra.mxu0 %v219
    %243 = vmatprep.subr.mxu0 0.0
    %244 = vmatpush1.msra.mxu0 %v220
    %245 = vmatprep.subr.mxu0 0.0
    %246 = vmatpush1.msra.mxu0 %v221
    %247 = vmatprep.subr.mxu0 0.0
    %248 = vmatpush1.msra.mxu0 %v222
    %249 = vmatprep.subr.mxu0 0.0
    %250 = vmatpush1.msra.mxu0 %v223
    %251 = vmatprep.subr.mxu0 0.0
    %252 = vmatpush1.msra.mxu0 %v224
    %253 = vmatprep.subr.mxu0 0.0
    %254 = vmatpush1.msra.mxu0 %v225
    %255 = vmatprep.subr.mxu0 0.0
    %256 = vmatpush1.msra.mxu0 %v226
    %257 = vmatprep.subr.mxu0 0.0
    %258 = vmatpush1.msra.mxu0 %v227
    %259 = vmatprep.subr.mxu0 0.0
    %260 = vmatpush1.msra.mxu0 %v228
    %261 = vmatprep.subr.mxu0 0.0
    %262 = vmatpush1.msra.mxu0 %v229
    %263 = vmatprep.subr.mxu0 0.0
    %264 = vmatpush1.msra.mxu0 %v230
    %265 = vmatprep.subr.mxu0 0.0
    %266 = vmatpush1.msra.mxu0 %v231
    %267 = vmatprep.subr.mxu0 0.0
    %268 = vmatpush1.msra.mxu0 %v232
    %269 = vmatprep.subr.mxu0 0.0
    %270 = vmatpush1.msra.mxu0 %v233
    %271 = vmatprep.subr.mxu0 0.0
    %272 = vmatpush1.msra.mxu0 0.0
    %273 = vmatprep.subr.mxu0 0.0
    %274 = vmatpush1.msra.mxu0 0.0
    %275 = vmatprep.subr.mxu0 0.0
    %276 = vmatpush1.msra.mxu0 0.0
    %277 = vmatprep.subr.mxu0 0.0
    %278 = vmatpush1.msra.mxu0 0.0
    %279 = vmatprep.subr.mxu0 0.0
    %280 = vmatpush1.msra.mxu0 0.0
    %281 = vmatprep.subr.mxu0 0.0
    %282 = vmatpush1.msra.mxu0 0.0
    %283 = vmatprep.subr.mxu0 0.0
    %284 = vmatpush1.msra.mxu0 0.0
    %285 = vmatprep.subr.mxu0 0.0
    %286 = vmatpush1.msra.mxu0 0.0
    %287 = vmatprep.subr.mxu0 0.0
    %288 = vmatpush1.msra.mxu0 0.0
    %289 = vmatprep.subr.mxu0 0.0
    %290 = vmatpush1.msra.mxu0 0.0
    %291 = vmatprep.subr.mxu0 0.0
    %292 = vmatpush1.msra.mxu0 0.0
    %293 = vmatprep.subr.mxu0 0.0
    %294 = vmatpush1.msra.mxu0 0.0
    %295 = vmatprep.subr.mxu0 0.0
    %296 = vmatpush1.msra.mxu0 0.0
    %297 = vmatprep.subr.mxu0 0.0
    %298 = vmatpush1.msra.mxu0 0.0
    %299 = vmatprep.subr.mxu0 0.0
    %300 = vmatpush1.msra.mxu0 0.0
    %301 = vmatprep.subr.mxu0 0.0
    %302 = vmatpush1.msra.mxu0 0.0
    %303 = vmatprep.mubr.f32.mxu0 0.0
    %304 = vmatmul.mubr.f32.gmra.mrb[0].mxu0 %v216
    %v305 = vpop.f32.mrb[0].mxu0
    %v306 = vadd.f32 %v238, %v305
    %v307 = vpop.f32.mrb[0].mxu0
    %308 = vdwg.mxu0
    %v309 = vxor.u32 %v306, 2147483648
    %v310 = vmul.f32 %v309, 1.442695
    %v311 = vpow.pop %v310
    %v312 = vadd.f32 %v311, 1.0
    %v313 = vrcp.pop %v312
    %v314 = vmul.f32 1.0, %v313
    %v315 = vtanh.pop %v306
    %s316 = scalar_lea.vmem %s2, 4
    %v317 = vld [vmem:[%s316] sm:$0x3]
    %319 = vrot.lane.b32.xlu0 %v317, 32
    %v320 = vpop.permute.xlu0 %319
    %v322 = vmul.f32 %v314, %v320
    %324 = vrot.lane.b32.xlu0 %v315, 64
    %v325 = vpop.permute.xlu0 %324
    %v327 = vmul.f32 %v314, %v325
    %329 = vrot.lane.b32.xlu0 %v327, 32
    %v330 = vpop.permute.xlu0 %329
    %v332 = vadd.f32 %v322, %v330
    %v333 = vtanh.pop %v332
    %335 = vrot.lane.b32.xlu0 %v333, 64
    %v336 = vpop.permute.xlu0 %335
    %v338 = vmul.f32 %v314, %v336
    %340 = vrot.lane.b32.xlu0 %v338, 32
    %v341 = vpop.permute.xlu0 %340
    %vm343 = vcmask 261120
    %v344 = vsel %vm343, %v341, 0.0
    %346 = vrot.lane.b32.xlu0 %v332, 96
    %v347 = vpop.permute.xlu0 %346
    %v349 = vsel %vm343, %v347, 0.0
    %s350 = scalar_lea.vmem [#allocation2], 384
    %v351 = vld [vmem:[%s350] sm:$0xff]
    %v352 = vld [vmem:[%s350 + $0x8] sm:$0xff]
    %v353 = vld [vmem:[%s350 + $0x10] sm:$0xff]
    %v354 = vld [vmem:[%s350 + $0x18] sm:$0xff]
    %v355 = vld [vmem:[%s350 + $0x20] sm:$0xff]
    %v356 = vld [vmem:[%s350 + $0x28] sm:$0xff]
    %v357 = vld [vmem:[%s350 + $0x30] sm:$0xff]
    %v358 = vld [vmem:[%s350 + $0x38] sm:$0xff]
    %v359 = vld [vmem:[%s350 + $0x40] sm:$0xff]
    %v360 = vld [vmem:[%s350 + $0x48] sm:$0xff]
    %v361 = vld [vmem:[%s350 + $0x50] sm:$0xff]
    %v362 = vld [vmem:[%s350 + $0x58] sm:$0xff]
    %v363 = vld [vmem:[%s350 + $0x60] sm:$0xff]
    %v364 = vld [vmem:[%s350 + $0x68] sm:$0xff]
    %v365 = vld [vmem:[%s350 + $0x70] sm:$0xff]
    %v366 = vld [vmem:[%s350 + $0x78] sm:$0xff]
    %v367 = vld [vmem:[%s1 + $0x3] sm:$0x1]
    %v368 = vlaneseq
    %v369 = vshrl.u32 %v368, 7
    %v370 = vsub.s32 0, %v369
    %v371 = vrot.slane %v367, %v370
    %372 = vmatprep.subr.mxu0 0.0
    %373 = vmatpush1.msra.mxu0 %v351
    %374 = vmatprep.subr.mxu0 0.0
    %375 = vmatpush1.msra.mxu0 %v352
    %376 = vmatprep.subr.mxu0 0.0
    %377 = vmatpush1.msra.mxu0 %v353
    %378 = vmatprep.subr.mxu0 0.0
    %379 = vmatpush1.msra.mxu0 %v354
    %380 = vmatprep.subr.mxu0 0.0
    %381 = vmatpush1.msra.mxu0 %v355
    %382 = vmatprep.subr.mxu0 0.0
    %383 = vmatpush1.msra.mxu0 %v356
    %384 = vmatprep.subr.mxu0 0.0
    %385 = vmatpush1.msra.mxu0 %v357
    %386 = vmatprep.subr.mxu0 0.0
    %387 = vmatpush1.msra.mxu0 %v358
    %388 = vmatprep.subr.mxu0 0.0
    %389 = vmatpush1.msra.mxu0 %v359
    %390 = vmatprep.subr.mxu0 0.0
    %391 = vmatpush1.msra.mxu0 %v360
    %392 = vmatprep.subr.mxu0 0.0
    %393 = vmatpush1.msra.mxu0 %v361
    %394 = vmatprep.subr.mxu0 0.0
    %395 = vmatpush1.msra.mxu0 %v362
    %396 = vmatprep.subr.mxu0 0.0
    %397 = vmatpush1.msra.mxu0 %v363
    %398 = vmatprep.subr.mxu0 0.0
    %399 = vmatpush1.msra.mxu0 %v364
    %400 = vmatprep.subr.mxu0 0.0
    %401 = vmatpush1.msra.mxu0 %v365
    %402 = vmatprep.subr.mxu0 0.0
    %403 = vmatpush1.msra.mxu0 %v366
    %404 = vmatprep.subr.mxu0 0.0
    %405 = vmatpush1.msra.mxu0 0.0
    %406 = vmatprep.subr.mxu0 0.0
    %407 = vmatpush1.msra.mxu0 0.0
    %408 = vmatprep.subr.mxu0 0.0
    %409 = vmatpush1.msra.mxu0 0.0
    %410 = vmatprep.subr.mxu0 0.0
    %411 = vmatpush1.msra.mxu0 0.0
    %412 = vmatprep.subr.mxu0 0.0
    %413 = vmatpush1.msra.mxu0 0.0
    %414 = vmatprep.subr.mxu0 0.0
    %415 = vmatpush1.msra.mxu0 0.0
    %416 = vmatprep.subr.mxu0 0.0
    %417 = vmatpush1.msra.mxu0 0.0
    %418 = vmatprep.subr.mxu0 0.0
    %419 = vmatpush1.msra.mxu0 0.0
    %420 = vmatprep.subr.mxu0 0.0
    %421 = vmatpush1.msra.mxu0 0.0
    %422 = vmatprep.subr.mxu0 0.0
    %423 = vmatpush1.msra.mxu0 0.0
    %424 = vmatprep.subr.mxu0 0.0
    %425 = vmatpush1.msra.mxu0 0.0
    %426 = vmatprep.subr.mxu0 0.0
    %427 = vmatpush1.msra.mxu0 0.0
    %428 = vmatprep.subr.mxu0 0.0
    %429 = vmatpush1.msra.mxu0 0.0
    %430 = vmatprep.subr.mxu0 0.0
    %431 = vmatpush1.msra.mxu0 0.0
    %432 = vmatprep.subr.mxu0 0.0
    %433 = vmatpush1.msra.mxu0 0.0
    %434 = vmatprep.subr.mxu0 0.0
    %435 = vmatpush1.msra.mxu0 0.0
    %436 = vmatprep.mubr.f32.mxu0 0.0
    %437 = vmatmul.mubr.f32.gmra.mrb[0].mxu0 %v344
    %v438 = vpop.f32.mrb[0].mxu0
    %v439 = vadd.f32 %v371, %v438
    %v440 = vpop.f32.mrb[0].mxu0
    %441 = vdwg.mxu0
    %v442 = vmax.f32 %v439, 0.0
    %s443 = scalar_lea.vmem [#allocation2], 512
    %v444 = vld [vmem:[%s443] sm:$0xff]
    %v445 = vld [vmem:[%s443 + $0x8] sm:$0xff]
    %v446 = vld [vmem:[%s443 + $0x10] sm:$0xff]
    %v447 = vld [vmem:[%s443 + $0x18] sm:$0xff]
    %v448 = vld [vmem:[%s443 + $0x20] sm:$0xff]
    %v449 = vld [vmem:[%s443 + $0x28] sm:$0xff]
    %v450 = vld [vmem:[%s443 + $0x30] sm:$0xff]
    %v451 = vld [vmem:[%s443 + $0x38] sm:$0xff]
    %v452 = vld [vmem:[%s443 + $0x40] sm:$0xff]
    %v453 = vld [vmem:[%s443 + $0x48] sm:$0xff]
    %v454 = vld [vmem:[%s443 + $0x50] sm:$0xff]
    %v455 = vld [vmem:[%s443 + $0x58] sm:$0xff]
    %v456 = vld [vmem:[%s443 + $0x60] sm:$0xff]
    %v457 = vld [vmem:[%s443 + $0x68] sm:$0xff]
    %v458 = vld [vmem:[%s443 + $0x70] sm:$0xff]
    %v459 = vld [vmem:[%s443 + $0x78] sm:$0xff]
    %v460 = vld [vmem:[%s1 + $0x4] sm:$0x1]
    %v461 = vlaneseq
    %v462 = vshrl.u32 %v461, 7
    %v463 = vsub.s32 0, %v462
    %v464 = vrot.slane %v460, %v463
    %465 = vmatprep.subr.mxu0 0.0
    %466 = vmatpush1.msra.mxu0 %v444
    %467 = vmatprep.subr.mxu0 0.0
    %468 = vmatpush1.msra.mxu0 %v445
    %469 = vmatprep.subr.mxu0 0.0
    %470 = vmatpush1.msra.mxu0 %v446
    %471 = vmatprep.subr.mxu0 0.0
    %472 = vmatpush1.msra.mxu0 %v447
    %473 = vmatprep.subr.mxu0 0.0
    %474 = vmatpush1.msra.mxu0 %v448
    %475 = vmatprep.subr.mxu0 0.0
    %476 = vmatpush1.msra.mxu0 %v449
    %477 = vmatprep.subr.mxu0 0.0
    %478 = vmatpush1.msra.mxu0 %v450
    %479 = vmatprep.subr.mxu0 0.0
    %480 = vmatpush1.msra.mxu0 %v451
    %481 = vmatprep.subr.mxu0 0.0
    %482 = vmatpush1.msra.mxu0 %v452
    %483 = vmatprep.subr.mxu0 0.0
    %484 = vmatpush1.msra.mxu0 %v453
    %485 = vmatprep.subr.mxu0 0.0
    %486 = vmatpush1.msra.mxu0 %v454
    %487 = vmatprep.subr.mxu0 0.0
    %488 = vmatpush1.msra.mxu0 %v455
    %489 = vmatprep.subr.mxu0 0.0
    %490 = vmatpush1.msra.mxu0 %v456
    %491 = vmatprep.subr.mxu0 0.0
    %492 = vmatpush1.msra.mxu0 %v457
    %493 = vmatprep.subr.mxu0 0.0
    %494 = vmatpush1.msra.mxu0 %v458
    %495 = vmatprep.subr.mxu0 0.0
    %496 = vmatpush1.msra.mxu0 %v459
    %497 = vmatprep.subr.mxu0 0.0
    %498 = vmatpush1.msra.mxu0 0.0
    %499 = vmatprep.subr.mxu0 0.0
    %500 = vmatpush1.msra.mxu0 0.0
    %501 = vmatprep.subr.mxu0 0.0
    %502 = vmatpush1.msra.mxu0 0.0
    %503 = vmatprep.subr.mxu0 0.0
    %504 = vmatpush1.msra.mxu0 0.0
    %505 = vmatprep.subr.mxu0 0.0
    %506 = vmatpush1.msra.mxu0 0.0
    %507 = vmatprep.subr.mxu0 0.0
    %508 = vmatpush1.msra.mxu0 0.0
    %509 = vmatprep.subr.mxu0 0.0
    %510 = vmatpush1.msra.mxu0 0.0
    %511 = vmatprep.subr.mxu0 0.0
    %512 = vmatpush1.msra.mxu0 0.0
    %513 = vmatprep.subr.mxu0 0.0
    %514 = vmatpush1.msra.mxu0 0.0
    %515 = vmatprep.subr.mxu0 0.0
    %516 = vmatpush1.msra.mxu0 0.0
    %517 = vmatprep.subr.mxu0 0.0
    %518 = vmatpush1.msra.mxu0 0.0
    %519 = vmatprep.subr.mxu0 0.0
    %520 = vmatpush1.msra.mxu0 0.0
    %521 = vmatprep.subr.mxu0 0.0
    %522 = vmatpush1.msra.mxu0 0.0
    %523 = vmatprep.subr.mxu0 0.0
    %524 = vmatpush1.msra.mxu0 0.0
    %525 = vmatprep.subr.mxu0 0.0
    %526 = vmatpush1.msra.mxu0 0.0
    %527 = vmatprep.subr.mxu0 0.0
    %528 = vmatpush1.msra.mxu0 0.0
    %529 = vmatprep.mubr.f32.mxu0 0.0
    %530 = vmatmul.mubr.f32.gmra.mrb[0].mxu0 %v442
    %v531 = vpop.f32.mrb[0].mxu0
    %v532 = vadd.f32 %v464, %v531
    %v533 = vpop.f32.mrb[0].mxu0
    %534 = vdwg.mxu0
    %v535 = vadd.f32 %v532, %v442
    %v536 = vmax.f32 %v535, 0.0
    %s537 = scalar_lea.vmem [#allocation2], 640
    %v538 = vld [vmem:[%s537] sm:$0xff]
    %v539 = vld [vmem:[%s537 + $0x8] sm:$0xff]
    %v540 = vld [vmem:[%s537 + $0x10] sm:$0xff]
    %v541 = vld [vmem:[%s537 + $0x18] sm:$0xff]
    %v542 = vld [vmem:[%s537 + $0x20] sm:$0xff]
    %v543 = vld [vmem:[%s537 + $0x28] sm:$0xff]
    %v544 = vld [vmem:[%s537 + $0x30] sm:$0xff]
    %v545 = vld [vmem:[%s537 + $0x38] sm:$0xff]
    %v546 = vld [vmem:[%s537 + $0x40] sm:$0xff]
    %v547 = vld [vmem:[%s537 + $0x48] sm:$0xff]
    %v548 = vld [vmem:[%s537 + $0x50] sm:$0xff]
    %v549 = vld [vmem:[%s537 + $0x58] sm:$0xff]
    %v550 = vld [vmem:[%s537 + $0x60] sm:$0xff]
    %v551 = vld [vmem:[%s537 + $0x68] sm:$0xff]
    %v552 = vld [vmem:[%s537 + $0x70] sm:$0xff]
    %v553 = vld [vmem:[%s537 + $0x78] sm:$0xff]
    %v554 = vld [vmem:[%s1 + $0x5] sm:$0x1]
    %v555 = vlaneseq
    %v556 = vshrl.u32 %v555, 7
    %v557 = vsub.s32 0, %v556
    %v558 = vrot.slane %v554, %v557
    %559 = vmatprep.subr.mxu0 0.0
    %560 = vmatpush1.msra.mxu0 %v538
    %561 = vmatprep.subr.mxu0 0.0
    %562 = vmatpush1.msra.mxu0 %v539
    %563 = vmatprep.subr.mxu0 0.0
    %564 = vmatpush1.msra.mxu0 %v540
    %565 = vmatprep.subr.mxu0 0.0
    %566 = vmatpush1.msra.mxu0 %v541
    %567 = vmatprep.subr.mxu0 0.0
    %568 = vmatpush1.msra.mxu0 %v542
    %569 = vmatprep.subr.mxu0 0.0
    %570 = vmatpush1.msra.mxu0 %v543
    %571 = vmatprep.subr.mxu0 0.0
    %572 = vmatpush1.msra.mxu0 %v544
    %573 = vmatprep.subr.mxu0 0.0
    %574 = vmatpush1.msra.mxu0 %v545
    %575 = vmatprep.subr.mxu0 0.0
    %576 = vmatpush1.msra.mxu0 %v546
    %577 = vmatprep.subr.mxu0 0.0
    %578 = vmatpush1.msra.mxu0 %v547
    %579 = vmatprep.subr.mxu0 0.0
    %580 = vmatpush1.msra.mxu0 %v548
    %581 = vmatprep.subr.mxu0 0.0
    %582 = vmatpush1.msra.mxu0 %v549
    %583 = vmatprep.subr.mxu0 0.0
    %584 = vmatpush1.msra.mxu0 %v550
    %585 = vmatprep.subr.mxu0 0.0
    %586 = vmatpush1.msra.mxu0 %v551
    %587 = vmatprep.subr.mxu0 0.0
    %588 = vmatpush1.msra.mxu0 %v552
    %589 = vmatprep.subr.mxu0 0.0
    %590 = vmatpush1.msra.mxu0 %v553
    %591 = vmatprep.subr.mxu0 0.0
    %592 = vmatpush1.msra.mxu0 0.0
    %593 = vmatprep.subr.mxu0 0.0
    %594 = vmatpush1.msra.mxu0 0.0
    %595 = vmatprep.subr.mxu0 0.0
    %596 = vmatpush1.msra.mxu0 0.0
    %597 = vmatprep.subr.mxu0 0.0
    %598 = vmatpush1.msra.mxu0 0.0
    %599 = vmatprep.subr.mxu0 0.0
    %600 = vmatpush1.msra.mxu0 0.0
    %601 = vmatprep.subr.mxu0 0.0
    %602 = vmatpush1.msra.mxu0 0.0
    %603 = vmatprep.subr.mxu0 0.0
    %604 = vmatpush1.msra.mxu0 0.0
    %605 = vmatprep.subr.mxu0 0.0
    %606 = vmatpush1.msra.mxu0 0.0
    %607 = vmatprep.subr.mxu0 0.0
    %608 = vmatpush1.msra.mxu0 0.0
    %609 = vmatprep.subr.mxu0 0.0
    %610 = vmatpush1.msra.mxu0 0.0
    %611 = vmatprep.subr.mxu0 0.0
    %612 = vmatpush1.msra.mxu0 0.0
    %613 = vmatprep.subr.mxu0 0.0
    %614 = vmatpush1.msra.mxu0 0.0
    %615 = vmatprep.subr.mxu0 0.0
    %616 = vmatpush1.msra.mxu0 0.0
    %617 = vmatprep.subr.mxu0 0.0
    %618 = vmatpush1.msra.mxu0 0.0
    %619 = vmatprep.subr.mxu0 0.0
    %620 = vmatpush1.msra.mxu0 0.0
    %621 = vmatprep.subr.mxu0 0.0
    %622 = vmatpush1.msra.mxu0 0.0
    %623 = vmatprep.mubr.f32.mxu0 0.0
    %624 = vmatmul.mubr.f32.gmra.mrb[0].mxu0 %v536
    %v625 = vpop.f32.mrb[0].mxu0
    %v626 = vadd.f32 %v558, %v625
    %v627 = vpop.f32.mrb[0].mxu0
    %628 = vdwg.mxu0
    %v629 = vtanh.pop %v626
    %v630 = vld [vmem:[%s1 + $0x7] sm:$0x1]
    %v631 = vlaneseq
    %v632 = vshrl.u32 %v631, 7
    %v633 = vsub.s32 0, %v632
    %v634 = vrot.slane %v630, %v633
    %v635 = vmul.f32 %v629, %v634
    %v636 = vld [vmem:[%s1 + $0x8] sm:$0x1]
    %v637 = vlaneseq
    %v638 = vshrl.u32 %v637, 7
    %v639 = vsub.s32 0, %v638
    %v640 = vrot.slane %v636, %v639
    %v641 = vadd.f32 %v635, %v640
    %s642 = scalar_lea.vmem [#allocation2], 768
    %v643 = vld [vmem:[%s642] sm:$0xff]
    %v644 = vld [vmem:[%s642 + $0x8] sm:$0xff]
    %v645 = vld [vmem:[%s642 + $0x10] sm:$0xff]
    %v646 = vld [vmem:[%s642 + $0x18] sm:$0xff]
    %v647 = vld [vmem:[%s642 + $0x20] sm:$0xff]
    %v648 = vld [vmem:[%s642 + $0x28] sm:$0xff]
    %v649 = vld [vmem:[%s642 + $0x30] sm:$0xff]
    %v650 = vld [vmem:[%s642 + $0x38] sm:$0xff]
    %v651 = vld [vmem:[%s642 + $0x40] sm:$0xff]
    %v652 = vld [vmem:[%s642 + $0x48] sm:$0xff]
    %v653 = vld [vmem:[%s642 + $0x50] sm:$0xff]
    %v654 = vld [vmem:[%s642 + $0x58] sm:$0xff]
    %v655 = vld [vmem:[%s642 + $0x60] sm:$0xff]
    %v656 = vld [vmem:[%s642 + $0x68] sm:$0xff]
    %v657 = vld [vmem:[%s642 + $0x70] sm:$0xff]
    %v658 = vld [vmem:[%s642 + $0x78] sm:$0xff]
    %v659 = vld [vmem:[%s1 + $0x6] sm:$0x1]
    %v660 = vlaneseq
    %v661 = vshrl.u32 %v660, 7
    %v662 = vsub.s32 0, %v661
    %v663 = vrot.slane %v659, %v662
    %664 = vmatprep.subr.mxu0 0.0
    %665 = vmatpush1.msra.mxu0 %v643
    %666 = vmatprep.subr.mxu0 0.0
    %667 = vmatpush1.msra.mxu0 %v644
    %668 = vmatprep.subr.mxu0 0.0
    %669 = vmatpush1.msra.mxu0 %v645
    %670 = vmatprep.subr.mxu0 0.0
    %671 = vmatpush1.msra.mxu0 %v646
    %672 = vmatprep.subr.mxu0 0.0
    %673 = vmatpush1.msra.mxu0 %v647
    %674 = vmatprep.subr.mxu0 0.0
    %675 = vmatpush1.msra.mxu0 %v648
    %676 = vmatprep.subr.mxu0 0.0
    %677 = vmatpush1.msra.mxu0 %v649
    %678 = vmatprep.subr.mxu0 0.0
    %679 = vmatpush1.msra.mxu0 %v650
    %680 = vmatprep.subr.mxu0 0.0
    %681 = vmatpush1.msra.mxu0 %v651
    %682 = vmatprep.subr.mxu0 0.0
    %683 = vmatpush1.msra.mxu0 %v652
    %684 = vmatprep.subr.mxu0 0.0
    %685 = vmatpush1.msra.mxu0 %v653
    %686 = vmatprep.subr.mxu0 0.0
    %687 = vmatpush1.msra.mxu0 %v654
    %688 = vmatprep.subr.mxu0 0.0
    %689 = vmatpush1.msra.mxu0 %v655
    %690 = vmatprep.subr.mxu0 0.0
    %691 = vmatpush1.msra.mxu0 %v656
    %692 = vmatprep.subr.mxu0 0.0
    %693 = vmatpush1.msra.mxu0 %v657
    %694 = vmatprep.subr.mxu0 0.0
    %695 = vmatpush1.msra.mxu0 %v658
    %696 = vmatprep.subr.mxu0 0.0
    %697 = vmatpush1.msra.mxu0 0.0
    %698 = vmatprep.subr.mxu0 0.0
    %699 = vmatpush1.msra.mxu0 0.0
    %700 = vmatprep.subr.mxu0 0.0
    %701 = vmatpush1.msra.mxu0 0.0
    %702 = vmatprep.subr.mxu0 0.0
    %703 = vmatpush1.msra.mxu0 0.0
    %704 = vmatprep.subr.mxu0 0.0
    %705 = vmatpush1.msra.mxu0 0.0
    %706 = vmatprep.subr.mxu0 0.0
    %707 = vmatpush1.msra.mxu0 0.0
    %708 = vmatprep.subr.mxu0 0.0
    %709 = vmatpush1.msra.mxu0 0.0
    %710 = vmatprep.subr.mxu0 0.0
    %711 = vmatpush1.msra.mxu0 0.0
    %712 = vmatprep.subr.mxu0 0.0
    %713 = vmatpush1.msra.mxu0 0.0
    %714 = vmatprep.subr.mxu0 0.0
    %715 = vmatpush1.msra.mxu0 0.0
    %716 = vmatprep.subr.mxu0 0.0
    %717 = vmatpush1.msra.mxu0 0.0
    %718 = vmatprep.subr.mxu0 0.0
    %719 = vmatpush1.msra.mxu0 0.0
    %720 = vmatprep.subr.mxu0 0.0
    %721 = vmatpush1.msra.mxu0 0.0
    %722 = vmatprep.subr.mxu0 0.0
    %723 = vmatpush1.msra.mxu0 0.0
    %724 = vmatprep.subr.mxu0 0.0
    %725 = vmatpush1.msra.mxu0 0.0
    %726 = vmatprep.subr.mxu0 0.0
    %727 = vmatpush1.msra.mxu0 0.0
    %728 = vmatprep.mubr.f32.mxu0 0.0
    %729 = vmatmul.mubr.f32.gmra.mrb[0].mxu0 %v536
    %v730 = vpop.f32.mrb[0].mxu0
    %v731 = vadd.f32 %v663, %v730
    %v732 = vpop.f32.mrb[0].mxu0
    %733 = vdwg.mxu0
    %vm734 = vcmp.gt.f32.partialorder %v731, 20.0
    %v735 = vmin.f32 %v731, 20.0
    %v736 = vmul.f32 %v735, 1.442695
    %v737 = vpow.pop %v736
    %v738 = vadd.f32 %v737, 1.0
    %v739 = vlog2.pop %v738
    %v740 = vmul.f32 %v739, 0.6931472
    %v741 = vmul.f32 -0.5, %v737
    %v742 = vadd.f32 %v741, 1.0
    %v743 = vmul.f32 %v742, %v737
    %v744 = vand.u32 2147483647, %v737
    %vm745 = vcmp.lt.f32.partialorder %v744, 0.0004427343
    %v746 = vsel %vm745, %v743, %v740
    %v747 = vsel %vm734, %v731, %v746
    %748 = vst [vmem:[%s3] sm:$0x3] %v641
    %s749 = scalar_lea.vmem %s3, 2
    %750 = vst [vmem:[%s749] sm:$0x3] %v747
    %s751 = scalar_lea.vmem %s3, 4
    %752 = vst [vmem:[%s751] sm:$0x3] %v344
    %s753 = scalar_lea.vmem %s3, 6
    %754 = vst [vmem:[%s753] sm:$0x3] %v349
    // Predicated region
    $region18: #{fnn_actor_forward.1} parent=1 // pred_check
      _
    $region19: #{fnn_actor_forward.1} parent=1 // pred_check_branch
      %756 = sbr.rel (0) target = $region21
    $region20: #{fnn_actor_forward.1} parent=1 // pred_region
      _
    $region21: #{fnn_actor_forward.1} parent=1 // pred_fallthru
      _
    // Predicated region
    $region22: #{fnn_actor_forward.1} parent=1 // pred_check
      _
    $region23: #{fnn_actor_forward.1} parent=1 // pred_check_branch
      %758 = sbr.rel (0) target = $region25
    $region24: #{fnn_actor_forward.1} parent=1 // pred_region
      _
    $region25: #{fnn_actor_forward.1} parent=1 // pred_fallthru
      _
    %759 = vsyncpa [#allocation3], 1

</llo_original>
